<compile_context>
chip_gen: v7x
topology: tpu7x:2x2x1
jax: 0.10.0
libtpu: 0.0.40
codegen_flags: <defaults>
</compile_context>

<pallas_src>
import functools

import jax
import jax.numpy as jnp
from jax import lax
from jax.experimental import pallas as pl
from jax.experimental.pallas import tpu as pltpu

_LANES = 128
_SUBLANES = 8
_SLAB = 64  # rows folded into the accumulator per inner-loop step (8 f32 vregs/operand)


def _round_up(x: int, m: int) -> int:
    return -(-x // m) * m


def _weighted_mse_kernel(yt_ref, yp_ref, out_ref, acc_ref, *,
                         steps, slabs_per_tile, full_slabs_last,
                         rem_rows_last, inv_n):
    i = pl.program_id(0)

    @pl.when(i == 0)
    def _init():
        acc_ref[...] = jnp.zeros_like(acc_ref)

    def accumulate(slab_idx):
        # One 64x128 slab per iteration: load, (upcast), diff, square, fold into
        # the (8, 128) accumulator with layout-preserving reshape + vreg adds.
        r0 = pl.multiple_of(slab_idx * _SLAB, _SLAB)
        d = (yt_ref[pl.ds(r0, _SLAB), :].astype(jnp.float32)
             - yp_ref[pl.ds(r0, _SLAB), :].astype(jnp.float32))
        sq = d * d
        acc_ref[...] += sq.reshape(-1, _SUBLANES, _LANES).sum(axis=0)

    # Every step except the last is fully valid: stream all slabs.
    @pl.when(i < steps - 1)
    def _main():
        @pl.loop(0, slabs_per_tile)
        def _(s):
            accumulate(s)

    # Last step: only the statically-known valid rows of the (possibly partial)
    # block are accumulated; garbage rows from the ragged-edge DMA are masked.
    @pl.when(i == steps - 1)
    def _last():
        @pl.loop(0, full_slabs_last)
        def _(s):
            accumulate(s)

        if rem_rows_last:  # static Python int
            r0 = full_slabs_last * _SLAB
            d = (yt_ref[pl.ds(r0, _SLAB), :].astype(jnp.float32)
                 - yp_ref[pl.ds(r0, _SLAB), :].astype(jnp.float32))
            sq = d * d
            row = lax.broadcasted_iota(jnp.int32, (_SLAB, _LANES), 0)
            sq = jnp.where(row < rem_rows_last, sq, 0.0)
            acc_ref[...] += sq.reshape(-1, _SUBLANES, _LANES).sum(axis=0)

        # Finalize: even lanes = column 0 -> weight 2.0, odd lanes = column 1 ->
        # weight 8.0 (128 lanes is even so column = flat_index % 2 = lane % 2).
        # Single cross-lane/sublane reduce + 1/N mean normalization.
        lane = lax.broadcasted_iota(jnp.int32, (_SUBLANES, _LANES), 1)
        w = jnp.where(lane % 2 == 0, jnp.float32(2.0), jnp.float32(8.0))
        out_ref[...] = jnp.sum(acc_ref[...] * w, keepdims=True) * inv_n


def my_loss(y_true: jax.Array, y_pred: jax.Array, *, tile_rows: int = 4096) -> jax.Array:
    """Weighted MSE loss: 2*MSE(col 0) + 8*MSE(col 1). Inputs: (N, 2)."""
    assert y_true.shape == y_pred.shape, "y_true / y_pred shape mismatch"
    n, c = y_true.shape
    assert c == 2, "MyLoss expects exactly 2 target columns"

    # Keep HBM arrays in their native floating dtype (bf16 stays bf16 -> half
    # the HBM read bytes); the kernel upcasts to f32 in-vreg before arithmetic.
    if y_true.dtype != y_pred.dtype:
        common = jnp.promote_types(y_true.dtype, y_pred.dtype)
        y_true, y_pred = y_true.astype(common), y_pred.astype(common)
    if not jnp.issubdtype(y_true.dtype, jnp.floating):
        y_true, y_pred = y_true.astype(jnp.float32), y_pred.astype(jnp.float32)

    total = 2 * n
    yt = y_true.reshape(-1)  # interleaved col0, col1, col0, ... (free bitcast)
    yp = y_pred.reshape(-1)

    # Lane-dense (rows, 128) view.  When 2N % 128 == 0 (N % 64 == 0, the common
    # case) this is a zero-copy reshape.  Otherwise pad only up to the next lane
    # multiple (zeros contribute zero squared error).  Row-count raggedness is
    # handled inside the kernel by masking the partial last block, NOT by padding.
    # TODO(synk): the remaining sub-128-element pad copy could be removed with a
    # manual-DMA 1-D tail path, at the cost of relying on Mosaic 1-D layouts.
    padded_total = _round_up(total, _LANES)
    if padded_total != total:
        pad = padded_total - total
        yt = jnp.pad(yt, (0, pad))
        yp = jnp.pad(yp, (0, pad))
    rows = padded_total // _LANES
    yt = yt.reshape(rows, _LANES)
    yp = yp.reshape(rows, _LANES)

    # Tile: multiple of the slab size; default 4096 rows (2 MiB/f32 block) keeps
    # the double-buffered working set (~8 MiB) inside every generation's default
    # scoped VMEM while amortizing per-step overhead.
    tn = max(_SLAB, min(_round_up(tile_rows, _SLAB), _round_up(rows, _SLAB)))
    steps = pl.cdiv(rows, tn)

    valid_rows_last = rows - (steps - 1) * tn
    full_slabs_last = valid_rows_last // _SLAB
    rem_rows_last = valid_rows_last - full_slabs_last * _SLAB

    # N is baked into the array shapes / grid anyway, so plumbing inv_n through
    # SMEM would not avoid a recompile per distinct N; keep it as a constant.
    kernel = functools.partial(
        _weighted_mse_kernel,
        steps=steps,
        slabs_per_tile=tn // _SLAB,
        full_slabs_last=full_slabs_last,
        rem_rows_last=rem_rows_last,
        inv_n=1.0 / float(n),
    )

    itemsize = jnp.dtype(y_true.dtype).itemsize
    cost = pl.CostEstimate(
        flops=6 * n,                                   # sub + mul + add over 2N elements
        transcendentals=0,
        bytes_accessed=2 * padded_total * itemsize + 4,
    )

    out = pl.pallas_call(
        kernel,
        out_shape=jax.ShapeDtypeStruct((1, 1), jnp.float32),
        grid_spec=pltpu.PrefetchScalarGridSpec(
            num_scalar_prefetch=0,
            grid=(steps,),
            in_specs=[
                pl.BlockSpec((tn, _LANES), lambda i: (i, 0)),
                pl.BlockSpec((tn, _LANES), lambda i: (i, 0)),
            ],
            out_specs=pl.BlockSpec((1, 1), lambda i: (0, 0)),
            scratch_shapes=[pltpu.VMEM((_SUBLANES, _LANES), jnp.float32)],
        ),
        compiler_params=pltpu.CompilerParams(
            dimension_semantics=("arbitrary",),
        ),
        cost_estimate=cost,
    )(yt, yp)

    return out[0, 0]


def my_loss_ref(y_true, y_pred):
    """Pure-JAX reference mirroring the PyTorch forward."""
    yt = y_true.astype(jnp.float32)
    yp = y_pred.astype(jnp.float32)
    mse0 = jnp.mean((yt[:, 0] - yp[:, 0]) ** 2)
    mse1 = jnp.mean((yt[:, 1] - yp[:, 1]) ** 2)
    return 2.0 * mse0 + 8.0 * mse1


if __name__ == "__main__":
    key = jax.random.PRNGKey(0)
    k1, k2, k3, k4, k5, k6 = jax.random.split(key, 6)

    # 1) Zero-copy path (N % 64 == 0), single grid step, f32.
    N = 256
    y_true = jax.random.normal(k1, (N, 2), dtype=jnp.float32)
    y_pred = jax.random.normal(k2, (N, 2), dtype=jnp.float32)
    loss = my_loss(y_true, y_pred)
    jax.block_until_ready(loss)
    ref = my_loss_ref(y_true, y_pred)
    assert jnp.allclose(loss, ref, rtol=1e-5, atol=1e-5), (loss, ref)

    # 2) Ragged N (minimal lane pad) + multi-step grid + masked partial last block.
    N2 = 5000
    y_true2 = jax.random.normal(k3, (N2, 2), dtype=jnp.float32)
    y_pred2 = jax.random.normal(k4, (N2, 2), dtype=jnp.float32)
    loss2 = my_loss(y_true2, y_pred2, tile_rows=64)  # force multiple grid steps
    jax.block_until_ready(loss2)
    ref2 = my_loss_ref(y_true2, y_pred2)
    assert jnp.allclose(loss2, ref2, rtol=1e-5, atol=1e-5), (loss2, ref2)

    # 3) bf16 inputs stay bf16 in HBM; upcast happens in-kernel; tiny masked tail.
    N3 = 192
    y_true3 = jax.random.normal(k5, (N3, 2), dtype=jnp.float32).astype(jnp.bfloat16)
    y_pred3 = jax.random.normal(k6, (N3, 2), dtype=jnp.float32).astype(jnp.bfloat16)
    loss3 = my_loss(y_true3, y_pred3)
    jax.block_until_ready(loss3)
    ref3 = my_loss_ref(y_true3, y_pred3)
    assert jnp.allclose(loss3, ref3, rtol=1e-4, atol=1e-4), (loss3, ref3)

    print("KERNEL_OK")
</pallas_src>

<mosaic_0001>
module attributes {stable_mosaic.version = 11 : i64} {
  func.func @_weighted_mse_kernel(%arg0: i32, %arg1: memref<64x128xf32, #tpu.memory_space<vmem>>, %arg2: memref<64x128xf32, #tpu.memory_space<vmem>>, %arg3: memref<1x1xf32, #tpu.memory_space<vmem>>, %arg4: memref<8x128xf32, #tpu.memory_space<vmem>>) attributes {dimension_semantics = [#tpu.dimension_semantics<arbitrary>], iteration_bounds = array<i64: 1>, scalar_prefetch = 0 : i64, scratch_operands = 1 : i64, tpu.core_type = #tpu.core_type<tc>, window_params = [{transform_indices = @transform_0, window_bounds = array<i64: 64, 128>}, {transform_indices = @transform_1, window_bounds = array<i64: 64, 128>}, {pipeline_mode = #tpu.pipeline_mode<synchronous>, transform_indices = @transform_2, window_bounds = array<i64: 1, 1>}]} {
    %c0_i32 = arith.constant 0 : i32
    %0 = arith.cmpi eq, %arg0, %c0_i32 : i32
    %1 = arith.extui %0 : i1 to i32
    %c0_i32_0 = arith.constant 0 : i32
    %2 = arith.cmpi ne, %1, %c0_i32_0 : i32
    scf.if %2 {
      %cst = arith.constant 0.000000e+00 : f32
      %9 = vector.broadcast %cst : f32 to vector<8x128xf32>
      %c0 = arith.constant 0 : index
      %c0_5 = arith.constant 0 : index
      %10 = vector.load %arg4[%c0, %c0_5] : memref<8x128xf32, #tpu.memory_space<vmem>>, vector<8x128xf32>
      tpu.vector_store %arg4[%c0, %c0_5], %9 {strides = array<i32>} : memref<8x128xf32, #tpu.memory_space<vmem>>, vector<8x128xf32>,
    } else {
    }
    %c0_i32_1 = arith.constant 0 : i32
    %3 = arith.cmpi slt, %arg0, %c0_i32_1 : i32
    %4 = arith.extui %3 : i1 to i32
    %c0_i32_2 = arith.constant 0 : i32
    %5 = arith.cmpi ne, %4, %c0_i32_2 : i32
    scf.if %5 {
      %c0_i32_5 = arith.constant 0 : i32
      %c1_i32 = arith.constant 1 : i32
      %9 = arith.muli %c0_i32_5, %c1_i32 : i32
      %c0_i32_6 = arith.constant 0 : i32
      %10 = arith.addi %c0_i32_6, %9 : i32
      %c64_i32 = arith.constant 64 : i32
      %11 = arith.muli %10, %c64_i32 : i32
      %12 = tpu.assume_multiple %11, 64 : i32
      %13 = arith.index_cast %12 : i32 to index
      %c0 = arith.constant 0 : index
      %14 = vector.load %arg1[%13, %c0] : memref<64x128xf32, #tpu.memory_space<vmem>>, vector<64x128xf32>
      %15 = arith.index_cast %12 : i32 to index
      %c0_7 = arith.constant 0 : index
      %16 = vector.load %arg2[%15, %c0_7] : memref<64x128xf32, #tpu.memory_space<vmem>>, vector<64x128xf32>
      %17 = arith.subf %14, %16 : vector<64x128xf32>
      %18 = arith.mulf %17, %17 : vector<64x128xf32>
      %c0_8 = arith.constant 0 : index
      %c0_9 = arith.constant 0 : index
      %19 = vector.load %arg4[%c0_8, %c0_9] : memref<8x128xf32, #tpu.memory_space<vmem>>, vector<8x128xf32>
      %20 = vector.shape_cast %18 : vector<64x128xf32> to vector<8x8x128xf32>
      %cst = arith.constant dense<0.000000e+00> : vector<8x128xf32>
      %21 = vector.multi_reduction <add>, %20, %cst [0] : vector<8x8x128xf32> to vector<8x128xf32>
      %22 = arith.addf %19, %21 : vector<8x128xf32>
      %c0_10 = arith.constant 0 : index
      %c0_11 = arith.constant 0 : index
      %23 = vector.load %arg4[%c0_10, %c0_11] : memref<8x128xf32, #tpu.memory_space<vmem>>, vector<8x128xf32>
      tpu.vector_store %arg4[%c0_10, %c0_11], %22 {strides = array<i32>} : memref<8x128xf32, #tpu.memory_space<vmem>>, vector<8x128xf32>,
      %c1_i32_12 = arith.constant 1 : i32
    } else {
    }
    %c0_i32_3 = arith.constant 0 : i32
    %6 = arith.cmpi eq, %arg0, %c0_i32_3 : i32
    %7 = arith.extui %6 : i1 to i32
    %c0_i32_4 = arith.constant 0 : i32
    %8 = arith.cmpi ne, %7, %c0_i32_4 : i32
    scf.if %8 {
      %c0_i32_5 = arith.constant 0 : i32
      %c0_i32_6 = arith.constant 0 : i32
      %9 = arith.addi %c0_i32_5, %c0_i32_6 : i32
      %c1_i32 = arith.constant 1 : i32
      scf.for %arg5 = %c0_i32_5 to %9 step %c1_i32  : i32 {
        %c1_i32_30 = arith.constant 1 : i32
        %56 = arith.muli %arg5, %c1_i32_30 : i32
        %c0_i32_31 = arith.constant 0 : i32
        %57 = arith.addi %c0_i32_31, %56 : i32
        %c64_i32 = arith.constant 64 : i32
        %58 = arith.muli %57, %c64_i32 : i32
        %59 = tpu.assume_multiple %58, 64 : i32
        %60 = arith.index_cast %59 : i32 to index
        %c0_32 = arith.constant 0 : index
        %61 = vector.load %arg1[%60, %c0_32] : memref<64x128xf32, #tpu.memory_space<vmem>>, vector<64x128xf32>
        %62 = arith.index_cast %59 : i32 to index
        %c0_33 = arith.constant 0 : index
        %63 = vector.load %arg2[%62, %c0_33] : memref<64x128xf32, #tpu.memory_space<vmem>>, vector<64x128xf32>
        %64 = arith.subf %61, %63 : vector<64x128xf32>
        %65 = arith.mulf %64, %64 : vector<64x128xf32>
        %c0_34 = arith.constant 0 : index
        %c0_35 = arith.constant 0 : index
        %66 = vector.load %arg4[%c0_34, %c0_35] : memref<8x128xf32, #tpu.memory_space<vmem>>, vector<8x128xf32>
        %67 = vector.shape_cast %65 : vector<64x128xf32> to vector<8x8x128xf32>
        %cst_36 = arith.constant dense<0.000000e+00> : vector<8x128xf32>
        %68 = vector.multi_reduction <add>, %67, %cst_36 [0] : vector<8x8x128xf32> to vector<8x128xf32>
        %69 = arith.addf %66, %68 : vector<8x128xf32>
        %c0_37 = arith.constant 0 : index
        %c0_38 = arith.constant 0 : index
        %70 = vector.load %arg4[%c0_37, %c0_38] : memref<8x128xf32, #tpu.memory_space<vmem>>, vector<8x128xf32>
        tpu.vector_store %arg4[%c0_37, %c0_38], %69 {strides = array<i32>} : memref<8x128xf32, #tpu.memory_space<vmem>>, vector<8x128xf32>,
      }
      %c0_i32_7 = arith.constant 0 : i32
      %c0 = arith.constant 0 : index
      %c0_8 = arith.constant 0 : index
      %10 = vector.load %arg1[%c0, %c0_8] : memref<64x128xf32, #tpu.memory_space<vmem>>, vector<64x128xf32>
      %c0_9 = arith.constant 0 : index
      %c0_10 = arith.constant 0 : index
      %11 = vector.load %arg2[%c0_9, %c0_10] : memref<64x128xf32, #tpu.memory_space<vmem>>, vector<64x128xf32>
      %12 = arith.subf %10, %11 : vector<64x128xf32>
      %13 = arith.mulf %12, %12 : vector<64x128xf32>
      %14 = tpu.iota {dimensions = array<i32: 0>} : vector<64x128xi32>
      %c4_i32 = arith.constant 4 : i32
      %15 = vector.broadcast %c4_i32 : i32 to vector<64x128xi32>
      %16 = arith.cmpi slt, %14, %15 : vector<64x128xi32>
      %cst = arith.constant 0.000000e+00 : f32
      %17 = vector.broadcast %cst : f32 to vector<64x128xf32>
      %18 = arith.select %16, %13, %17 : vector<64x128xi1>, vector<64x128xf32>
      %c0_11 = arith.constant 0 : index
      %c0_12 = arith.constant 0 : index
      %19 = vector.load %arg4[%c0_11, %c0_12] : memref<8x128xf32, #tpu.memory_space<vmem>>, vector<8x128xf32>
      %20 = vector.shape_cast %18 : vector<64x128xf32> to vector<8x8x128xf32>
      %cst_13 = arith.constant dense<0.000000e+00> : vector<8x128xf32>
      %21 = vector.multi_reduction <add>, %20, %cst_13 [0] : vector<8x8x128xf32> to vector<8x128xf32>
      %22 = arith.addf %19, %21 : vector<8x128xf32>
      %c0_14 = arith.constant 0 : index
      %c0_15 = arith.constant 0 : index
      %23 = vector.load %arg4[%c0_14, %c0_15] : memref<8x128xf32, #tpu.memory_space<vmem>>, vector<8x128xf32>
      tpu.vector_store %arg4[%c0_14, %c0_15], %22 {strides = array<i32>} : memref<8x128xf32, #tpu.memory_space<vmem>>, vector<8x128xf32>,
      %24 = tpu.iota {dimensions = array<i32: 1>} : vector<8x128xi32>
      %c2_i32 = arith.constant 2 : i32
      %c0_i32_16 = arith.constant 0 : i32
      %25 = arith.cmpi eq, %c2_i32, %c0_i32_16 : i32
      %c1_i32_17 = arith.constant 1 : i32
      %26 = arith.select %25, %c1_i32_17, %c2_i32 : i32
      %27 = vector.broadcast %26 : i32 to vector<8x128xi32>
      %28 = arith.remsi %24, %27 : vector<8x128xi32>
      %c0_i32_18 = arith.constant 0 : i32
      %29 = vector.broadcast %c0_i32_18 : i32 to vector<8x128xi32>
      %30 = arith.cmpi ne, %28, %29 : vector<8x128xi32>
      %c0_i32_19 = arith.constant 0 : i32
      %31 = vector.broadcast %c0_i32_19 : i32 to vector<8x128xi32>
      %32 = arith.cmpi slt, %28, %31 : vector<8x128xi32>
      %c0_i32_20 = arith.constant 0 : i32
      %33 = arith.cmpi slt, %26, %c0_i32_20 : i32
      %34 = vector.broadcast %33 : i1 to vector<8x128xi1>
      %35 = vector.broadcast %34 : vector<8x128xi1> to vector<8x128xi1>
      %36 = arith.xori %32, %35 : vector<8x128xi1>
      %37 = arith.andi %36, %30 : vector<8x128xi1>
      %38 = vector.broadcast %26 : i32 to vector<8x128xi32>
      %39 = arith.addi %28, %38 : vector<8x128xi32>
      %40 = arith.select %37, %39, %28 : vector<8x128xi1>, vector<8x128xi32>
      %c0_i32_21 = arith.constant 0 : i32
      %41 = vector.broadcast %c0_i32_21 : i32 to vector<8x128xi32>
      %42 = arith.cmpi eq, %40, %41 : vector<8x128xi32>
      %cst_22 = arith.constant 2.000000e+00 : f32
      %cst_23 = arith.constant 8.000000e+00 : f32
      %43 = vector.broadcast %cst_22 : f32 to vector<8x128xf32>
      %44 = vector.broadcast %cst_23 : f32 to vector<8x128xf32>
      %45 = arith.select %42, %43, %44 : vector<8x128xi1>, vector<8x128xf32>
      %c0_24 = arith.constant 0 : index
      %c0_25 = arith.constant 0 : index
      %46 = vector.load %arg4[%c0_24, %c0_25] : memref<8x128xf32, #tpu.memory_space<vmem>>, vector<8x128xf32>
      %47 = arith.mulf %46, %45 : vector<8x128xf32>
      %48 = vector.shape_cast %47 : vector<8x128xf32> to vector<1x8x128xf32>
      %cst_26 = arith.constant dense<0.000000e+00> : vector<1xf32>
      %49 = vector.multi_reduction <add>, %48, %cst_26 [1, 2] : vector<1x8x128xf32> to vector<1xf32>
      %50 = vector.shape_cast %49 : vector<1xf32> to vector<1x1x1xf32>
      %51 = vector.extract %50[0, 0, 0] : f32 from vector<1x1x1xf32>
      %52 = vector.broadcast %51 : f32 to vector<1x1xf32>
      %cst_27 = arith.constant 3.906250e-03 : f32
      %53 = vector.broadcast %cst_27 : f32 to vector<1x1xf32>
      %54 = arith.mulf %52, %53 : vector<1x1xf32>
      %c0_28 = arith.constant 0 : index
      %c0_29 = arith.constant 0 : index
      %55 = vector.load %arg3[%c0_28, %c0_29] : memref<1x1xf32, #tpu.memory_space<vmem>>, vector<1x1xf32>
      tpu.vector_store %arg3[%c0_28, %c0_29], %54 {strides = array<i32>} : memref<1x1xf32, #tpu.memory_space<vmem>>, vector<1x1xf32>,
    } else {
    }
    return
  }
  func.func @transform_0(%arg0: i32) -> (i32, i32) {
    %c0_i32 = arith.constant 0 : i32
    %c0_i32_0 = arith.constant 0 : i32
    return %arg0, %c0_i32 : i32, i32
  }
  func.func @transform_1(%arg0: i32) -> (i32, i32) {
    %c0_i32 = arith.constant 0 : i32
    %c0_i32_0 = arith.constant 0 : i32
    return %arg0, %c0_i32 : i32, i32
  }
  func.func @transform_2(%arg0: i32) -> (i32, i32) {
    %c0_i32 = arith.constant 0 : i32
    %c0_i32_0 = arith.constant 0 : i32
    %c0_i32_1 = arith.constant 0 : i32
    return %c0_i32, %c0_i32_0 : i32, i32
  }
}

</mosaic_0001>

<llo_original>
// kernel: tpu_custom_call.1
$region0: #{tpu_custom_call.1}
  #allocation0 [shape = 'u32[]', space=smem, size = 0x4, offset = 0x4, fixed_abs, tag = 'smem constant byte address 0x4 - core index']
  #allocation1 [shape = 'u32[144,128]{1,0:T(1,128)}', space=vmem, size = 0x12000, scoped, tag = 'internal scratch']
  #allocation2 [shape = 'f32[8,128]{1,0:T(8,128)}', space=vmem, size = 0x1000, scoped, tag = 'scratch operand']
  %s0 = inlined_call_operand.hbm [shape: f32[4,128], index: 0, kind: input, shape index: {}]
  %s1 = inlined_call_operand.hbm [shape: f32[4,128], index: 1, kind: input, shape index: {}]
  %s2 = inlined_call_operand.hbm [shape: f32[1,1], index: 2, kind: output, shape index: {}]
  %s3 = sld [smem:[#allocation0]]
  $region38: #{tpu_custom_call.1} parent=0
    _
  %s5 = ssub.s32 1, %s3
  %s6 = scalar_select 0, %s5, %s3
  $region1: #{tpu_custom_call.1} parent=0
    #allocation3 [shape = 'u8[32768]{0}', space=vmem, size = 0x8000, scoped, tag = 'input window, operand 0, single buffered']
    #allocation4 [shape = 's32[1]{0}', space=sflag, size = 0x4, scoped, tag = 'scoped memory for tpu_custom_call.1']
    #allocation5 [shape = 's32[1]{0}', space=sflag, size = 0x4, scoped, tag = 'scoped memory for tpu_custom_call.1']
    #allocation6 [shape = 'u8[32768]{0}', space=vmem, size = 0x8000, scoped, tag = 'input window, operand 1, single buffered']
    #allocation7 [shape = 's32[1]{0}', space=sflag, size = 0x4, scoped, tag = 'scoped memory for tpu_custom_call.1']
    #allocation8 [shape = 'u8[512]{0}', space=vmem, size = 0x400, scoped, tag = 'output window, operand 0, single buffered']
    %7 = vsyncpa [#allocation4], 0
    %8 = vsyncpa [#allocation7], 0
    %9 = vsyncpa [#allocation5], 0
    // Predicated region
    $region2: #{tpu_custom_call.1} parent=1 // pred_check
      _
    $region3: #{tpu_custom_call.1} parent=1 // pred_check_branch
      %11 = sbr.rel (0) target = $region5
    $region4: #{tpu_custom_call.1} parent=1 // pred_region
      %s13 = ssub.s32 1024, 64
      %14 = vsyncadd [#allocation4], %s13
      %s15 = sshll.u32 [#allocation3], 4
      %s16 = int_to_ptr.vmem [resolvable:$true] %s15
      %21 = dma.hbm_to_vmem [thread:$0]  %s0, 64, %s16, [#allocation4], 64, 64, 4
    $region5: #{tpu_custom_call.1} parent=1 // pred_fallthru
      _
    // Predicated region
    $region6: #{tpu_custom_call.1} parent=1 // pred_check
      _
    $region7: #{tpu_custom_call.1} parent=1 // pred_check_branch
      %23 = sbr.rel (0) target = $region9
    $region8: #{tpu_custom_call.1} parent=1 // pred_region
      %s25 = ssub.s32 1024, 64
      %26 = vsyncadd [#allocation7], %s25
      %s27 = sshll.u32 [#allocation6], 4
      %s28 = int_to_ptr.vmem [resolvable:$true] %s27
      %33 = dma.hbm_to_vmem [thread:$0]  %s1, 64, %s28, [#allocation7], 64, 64, 4
    $region9: #{tpu_custom_call.1} parent=1 // pred_fallthru
      _
    // Predicated region
    $region10: #{tpu_custom_call.1} parent=1 // pred_check
      _
    $region11: #{tpu_custom_call.1} parent=1 // pred_check_branch
      %35 = sbr.rel (0) target = $region13
    $region12: #{tpu_custom_call.1} parent=1 // pred_region
      %36 = dma.done [#allocation4], 1024
    $region13: #{tpu_custom_call.1} parent=1 // pred_fallthru
      _
    // Predicated region
    $region14: #{tpu_custom_call.1} parent=1 // pred_check
      _
    $region15: #{tpu_custom_call.1} parent=1 // pred_check_branch
      %38 = sbr.rel (0) target = $region17
    $region16: #{tpu_custom_call.1} parent=1 // pred_region
      %39 = dma.done [#allocation7], 1024
    $region17: #{tpu_custom_call.1} parent=1 // pred_fallthru
      _
    %p40 = scmp.eq.s32.totalorder 0, 0
    // Predicated region
    $region18: #{tpu_custom_call.1} parent=1 // pred_check
      %p41 = pneg %p40
    $region19: #{tpu_custom_call.1} parent=1 // pred_check_branch
      %43 = sbr.rel (%p41) target = $region21
    $region20: #{tpu_custom_call.1} parent=1 // pred_region
      %44 = vst [vmem:[#allocation2] sm:$0xff] 0.0
    $region21: #{tpu_custom_call.1} parent=1 // pred_fallthru
      _
    %p45 = scmp.lt.s32.totalorder 0, 0
    // Predicated region
    $region22: #{tpu_custom_call.1} parent=1 // pred_check
      %p46 = pneg %p45
    $region23: #{tpu_custom_call.1} parent=1 // pred_check_branch
      %48 = sbr.rel (%p46) target = $region25
    $region24: #{tpu_custom_call.1} parent=1 // pred_region
      %v49 = vld [vmem:[#allocation3] sm:$0xff]
      %v50 = vld [vmem:[#allocation3 + $0x8] sm:$0xff]
      %v51 = vld [vmem:[#allocation3 + $0x10] sm:$0xff]
      %v52 = vld [vmem:[#allocation3 + $0x18] sm:$0xff]
      %v53 = vld [vmem:[#allocation3 + $0x20] sm:$0xff]
      %v54 = vld [vmem:[#allocation3 + $0x28] sm:$0xff]
      %v55 = vld [vmem:[#allocation3 + $0x30] sm:$0xff]
      %v56 = vld [vmem:[#allocation3 + $0x38] sm:$0xff]
      %v57 = vld [vmem:[#allocation6] sm:$0xff]
      %v58 = vld [vmem:[#allocation6 + $0x8] sm:$0xff]
      %v59 = vld [vmem:[#allocation6 + $0x10] sm:$0xff]
      %v60 = vld [vmem:[#allocation6 + $0x18] sm:$0xff]
      %v61 = vld [vmem:[#allocation6 + $0x20] sm:$0xff]
      %v62 = vld [vmem:[#allocation6 + $0x28] sm:$0xff]
      %v63 = vld [vmem:[#allocation6 + $0x30] sm:$0xff]
      %v64 = vld [vmem:[#allocation6 + $0x38] sm:$0xff]
      %v65 = vsub.f32 %v49, %v57
      %v66 = vsub.f32 %v50, %v58
      %v67 = vsub.f32 %v51, %v59
      %v68 = vsub.f32 %v52, %v60
      %v69 = vsub.f32 %v53, %v61
      %v70 = vsub.f32 %v54, %v62
      %v71 = vsub.f32 %v55, %v63
      %v72 = vsub.f32 %v56, %v64
      %v73 = vmul.f32 %v65, %v65
      %v74 = vmul.f32 %v66, %v66
      %v75 = vmul.f32 %v67, %v67
      %v76 = vmul.f32 %v68, %v68
      %v77 = vmul.f32 %v69, %v69
      %v78 = vmul.f32 %v70, %v70
      %v79 = vmul.f32 %v71, %v71
      %v80 = vmul.f32 %v72, %v72
      %v81 = vld [vmem:[#allocation2] sm:$0xff]
      %v82 = vadd.f32 %v73, %v74
      %v83 = vadd.f32 %v82, %v75
      %v84 = vadd.f32 %v83, %v76
      %v85 = vadd.f32 %v84, %v77
      %v86 = vadd.f32 %v85, %v78
      %v87 = vadd.f32 %v86, %v79
      %v88 = vadd.f32 %v87, %v80
      %v89 = vadd.f32 %v81, %v88
      %90 = vst [vmem:[#allocation2] sm:$0xff] %v89
    $region25: #{tpu_custom_call.1} parent=1 // pred_fallthru
      _
    // Predicated region
    $region26: #{tpu_custom_call.1} parent=1 // pred_check
      %p91 = pneg %p40
    $region27: #{tpu_custom_call.1} parent=1 // pred_check_branch
      %93 = sbr.rel (%p91) target = $region29
    $region28: #{tpu_custom_call.1} parent=1 // pred_region
      %v94 = vld [vmem:[#allocation3] sm:$0xff]
      %v95 = vld [vmem:[#allocation3 + $0x8] sm:$0xff]
      %v96 = vld [vmem:[#allocation3 + $0x10] sm:$0xff]
      %v97 = vld [vmem:[#allocation3 + $0x18] sm:$0xff]
      %v98 = vld [vmem:[#allocation3 + $0x20] sm:$0xff]
      %v99 = vld [vmem:[#allocation3 + $0x28] sm:$0xff]
      %v100 = vld [vmem:[#allocation3 + $0x30] sm:$0xff]
      %v101 = vld [vmem:[#allocation3 + $0x38] sm:$0xff]
      %v102 = vld [vmem:[#allocation6] sm:$0xff]
      %v103 = vld [vmem:[#allocation6 + $0x8] sm:$0xff]
      %v104 = vld [vmem:[#allocation6 + $0x10] sm:$0xff]
      %v105 = vld [vmem:[#allocation6 + $0x18] sm:$0xff]
      %v106 = vld [vmem:[#allocation6 + $0x20] sm:$0xff]
      %v107 = vld [vmem:[#allocation6 + $0x28] sm:$0xff]
      %v108 = vld [vmem:[#allocation6 + $0x30] sm:$0xff]
      %v109 = vld [vmem:[#allocation6 + $0x38] sm:$0xff]
      %v110 = vsub.f32 %v94, %v102
      %v111 = vsub.f32 %v95, %v103
      %v112 = vsub.f32 %v96, %v104
      %v113 = vsub.f32 %v97, %v105
      %v114 = vsub.f32 %v98, %v106
      %v115 = vsub.f32 %v99, %v107
      %v116 = vsub.f32 %v100, %v108
      %v117 = vsub.f32 %v101, %v109
      %v118 = vmul.f32 %v110, %v110
      %v119 = vmul.f32 %v111, %v111
      %v120 = vmul.f32 %v112, %v112
      %v121 = vmul.f32 %v113, %v113
      %v122 = vmul.f32 %v114, %v114
      %v123 = vmul.f32 %v115, %v115
      %v124 = vmul.f32 %v116, %v116
      %v125 = vmul.f32 %v117, %v117
      %v126 = vlaneseq
      %v127 = vshrl.u32 %v126, 7
      %v128 = vadd.s32 %v127, 8
      %v129 = vadd.s32 %v127, 16
      %v130 = vadd.s32 %v127, 24
      %v131 = vadd.s32 %v127, 32
      %v132 = vadd.s32 %v127, 40
      %v133 = vadd.s32 %v127, 48
      %v134 = vadd.s32 %v127, 56
      %vm135 = vcmp.lt.s32.totalorder %v127, 4
      %vm136 = vcmp.lt.s32.totalorder %v128, 4
      %vm137 = vcmp.lt.s32.totalorder %v129, 4
      %vm138 = vcmp.lt.s32.totalorder %v130, 4
      %vm139 = vcmp.lt.s32.totalorder %v131, 4
      %vm140 = vcmp.lt.s32.totalorder %v132, 4
      %vm141 = vcmp.lt.s32.totalorder %v133, 4
      %vm142 = vcmp.lt.s32.totalorder %v134, 4
      %v143 = vsel %vm135, %v118, 0.0
      %v144 = vsel %vm136, %v119, 0.0
      %v145 = vsel %vm137, %v120, 0.0
      %v146 = vsel %vm138, %v121, 0.0
      %v147 = vsel %vm139, %v122, 0.0
      %v148 = vsel %vm140, %v123, 0.0
      %v149 = vsel %vm141, %v124, 0.0
      %v150 = vsel %vm142, %v125, 0.0
      %v151 = vld [vmem:[#allocation2] sm:$0xff]
      %v152 = vadd.f32 %v143, %v144
      %v153 = vadd.f32 %v152, %v145
      %v154 = vadd.f32 %v153, %v146
      %v155 = vadd.f32 %v154, %v147
      %v156 = vadd.f32 %v155, %v148
      %v157 = vadd.f32 %v156, %v149
      %v158 = vadd.f32 %v157, %v150
      %v159 = vadd.f32 %v151, %v158
      %160 = vst [vmem:[#allocation2] sm:$0xff] %v159
      %v161 = vlaneseq
      %v162 = vand.u32 %v161, 127
      %vm163 = vcmp.lt.s32.totalorder %v162, 0
      %v164 = vsub.s32 0, %v162
      %v165 = vsel %vm163, %v164, %v162
      %v166 = vshrl.u32 %v165, 1
      %v167 = vand.u32 %v165, 1
      %v168 = vsub.s32 0, %v167
      %v169 = vsel %vm163, %v168, %v167
      %vm170 = vcmp.ne.s32.totalorder %v169, 0
      %vm171 = vcmp.lt.s32.totalorder %v169, 0
      %vm172 = vmand %vm171, %vm170
      %v173 = vadd.s32 %v169, 2
      %v174 = vsel %vm172, %v173, %v169
      %vm175 = vcmp.eq.s32.totalorder %v174, 0
      %v176 = vsel %vm175, 2.0, 8.0
      %v177 = vld [vmem:[#allocation2] sm:$0xff]
      %v178 = vmul.f32 %v177, %v176
      %179 = vadd.xlane.f32.xlu0 %v178
      %v180 = vpop.xlane.xlu0 %179
      %v181 = vrot.slane %v180, 4
      %v182 = vadd.f32 %v180, %v181
      %v183 = vrot.slane %v182, 2
      %v184 = vadd.f32 %v182, %v183
      %v185 = vrot.slane %v184, 1
      %v186 = vadd.f32 %v184, %v185
      %s187 = vtos %v186
      %v188 = vstv %s187
      %v189 = vmul.f32 %v188, 0.00390625
      %vm190 = vcmask 0
      %191 = vst.msk [vmem:[#allocation8] sm:$0x1] %vm190, %v189
    $region29: #{tpu_custom_call.1} parent=1 // pred_fallthru
      _
    // Predicated region
    $region30: #{tpu_custom_call.1} parent=1 // pred_check
      _
    $region31: #{tpu_custom_call.1} parent=1 // pred_check_branch
      %193 = sbr.rel (0) target = $region33
    $region32: #{tpu_custom_call.1} parent=1 // pred_region
      %s195 = ssub.s32 16, 16
      %196 = vsyncadd [#allocation5], %s195
      %s198 = sshll.u32 [#allocation8], 4
      %s199 = int_to_ptr.vmem [resolvable:$true] %s198
      %201 = dma.vmem_to_hbm [thread:$0]  %s199, 16, %s2, [#allocation5]
    $region33: #{tpu_custom_call.1} parent=1 // pred_fallthru
      _
    // Predicated region
    $region34: #{tpu_custom_call.1} parent=1 // pred_check
      _
    $region35: #{tpu_custom_call.1} parent=1 // pred_check_branch
      %203 = sbr.rel (0) target = $region37
    $region36: #{tpu_custom_call.1} parent=1 // pred_region
      %204 = dma.done [#allocation5], 16
    $region37: #{tpu_custom_call.1} parent=1 // pred_fallthru
      _
    %205 = vsyncpa [#allocation4], 1
    %206 = vsyncpa [#allocation7], 1
    %207 = vsyncpa [#allocation5], 1

</llo_original>
